<compile_context>
chip_gen: v6e
topology: v6e:2x2x1
jax: 0.10.0
libtpu: 0.0.40
codegen_flags: <defaults>
</compile_context>

<pallas_src>
import jax
import jax.numpy as jnp
from jax.experimental import pallas as pl
from jax.experimental.pallas import tpu as pltpu


def _make_dwconv_kernel(H, W, Ho, Wo, K, stride, padding, dilation):
    def kernel(w_ref, b_ref, x_ref, o_ref, xp_ref):
        # w_ref : (C, K*K) f32, SMEM     b_ref : (C,) f32, SMEM
        # x_ref : (1, 1, H, W) VMEM      o_ref : (1, 1, Ho, Wo) VMEM
        # xp_ref: (H+2p, W+2p) VMEM scratch (zero-padded input plane)
        c = pl.program_id(1)

        # Zero-pad the input plane entirely in VMEM (no extra HBM pass).
        xp_ref[...] = jnp.zeros_like(xp_ref)
        xp_ref[padding:padding + H, padding:padding + W] = x_ref[0, 0, :, :]
        xp = xp_ref[...]

        acc = jnp.zeros((Ho, Wo), dtype=jnp.float32)
        # K*K taps, statically unrolled: shifted-slice * per-channel scalar.
        for kh in range(K):
            for kw in range(K):
                h0 = kh * dilation
                w0 = kw * dilation
                if stride == 1:
                    tap = xp[h0:h0 + Ho, w0:w0 + Wo]
                else:
                    tap = jax.lax.slice(
                        xp,
                        (h0, w0),
                        (h0 + (Ho - 1) * stride + 1, w0 + (Wo - 1) * stride + 1),
                        (stride, stride),
                    )
                acc = acc + tap * w_ref[c, kh * K + kw]

        o_ref[0, 0, :, :] = (acc + b_ref[c]).astype(o_ref.dtype)

    return kernel


def depthwise_conv2d(x, weight, bias=None, *, stride=1, padding=0, dilation=1):
    """x: (N, C, H, W); weight: (C, 1, K, K) (PyTorch grouped-conv layout); bias: (C,)."""
    N, C, H, W = x.shape
    Cw, cpg, KH, KW = weight.shape
    assert Cw == C and cpg == 1 and KH == KW, "depthwise weight must be (C, 1, K, K)"
    K = KH
    Ho = (H + 2 * padding - dilation * (K - 1) - 1) // stride + 1
    Wo = (W + 2 * padding - dilation * (K - 1) - 1) // stride + 1

    w_flat = weight.reshape(C, K * K).astype(jnp.float32)
    b = (bias if bias is not None else jnp.zeros((C,), jnp.float32)).astype(jnp.float32)

    kernel = _make_dwconv_kernel(H, W, Ho, Wo, K, stride, padding, dilation)

    return pl.pallas_call(
        kernel,
        out_shape=jax.ShapeDtypeStruct((N, C, Ho, Wo), x.dtype),
        grid=(N, C),
        in_specs=[
            pl.BlockSpec(memory_space=pltpu.MemorySpace.SMEM),            # weights (C, K*K)
            pl.BlockSpec(memory_space=pltpu.MemorySpace.SMEM),            # bias (C,)
            pl.BlockSpec((1, 1, H, W), lambda n, c: (n, c, 0, 0)),        # one input plane
        ],
        out_specs=pl.BlockSpec((1, 1, Ho, Wo), lambda n, c: (n, c, 0, 0)),
        scratch_shapes=[pltpu.VMEM((H + 2 * padding, W + 2 * padding), jnp.float32)],
        compiler_params=pltpu.CompilerParams(
            dimension_semantics=("parallel", "parallel")),
    )(w_flat, b, x)


def _reference(x, weight, bias, stride, padding, dilation):
    # Pure-JAX reference matching PyTorch grouped Conv2d (cross-correlation).
    C = x.shape[1]
    y = jax.lax.conv_general_dilated(
        x, weight,
        window_strides=(stride, stride),
        padding=[(padding, padding), (padding, padding)],
        rhs_dilation=(dilation, dilation),
        dimension_numbers=("NCHW", "OIHW", "NCHW"),
        feature_group_count=C,
    )
    if bias is not None:
        y = y + bias[None, :, None, None]
    return y


if __name__ == "__main__":
    key = jax.random.PRNGKey(0)
    k_x, k_w, k_b = jax.random.split(key, 3)

    # ConvNeXT-style depthwise conv config: 7x7 kernel, stride 1, padding 3.
    N, C, H, W = 2, 4, 16, 16
    K, stride, padding, dilation = 7, 1, 3, 1

    x = jax.random.normal(k_x, (N, C, H, W), dtype=jnp.float32)
    weight = 0.1 * jax.random.normal(k_w, (C, 1, K, K), dtype=jnp.float32)
    bias = 0.1 * jax.random.normal(k_b, (C,), dtype=jnp.float32)

    out = depthwise_conv2d(x, weight, bias, stride=stride, padding=padding,
                           dilation=dilation)
    out = jax.block_until_ready(out)

    ref = _reference(x, weight, bias, stride, padding, dilation)
    assert out.shape == ref.shape == (N, C, H, W), out.shape
    max_err = float(jnp.abs(out - ref).max())
    assert jnp.allclose(out, ref, atol=1e-4, rtol=1e-4), max_err

    print("KERNEL_OK")
</pallas_src>

<mosaic_0001>
module attributes {stable_mosaic.version = 11 : i64} {
  func.func @kernel(%arg0: i32, %arg1: i32, %arg2: memref<4x49xf32, #tpu.memory_space<smem>>, %arg3: memref<4xf32, #tpu.memory_space<smem>>, %arg4: memref<1x1x16x16xf32, #tpu.memory_space<vmem>>, %arg5: memref<1x1x16x16xf32, #tpu.memory_space<vmem>>, %arg6: memref<22x22xf32, #tpu.memory_space<vmem>>) attributes {dimension_semantics = [#tpu.dimension_semantics<parallel>, #tpu.dimension_semantics<parallel>], iteration_bounds = array<i64: 2, 4>, scalar_prefetch = 0 : i64, scratch_operands = 1 : i64, tpu.core_type = #tpu.core_type<tc>, window_params = [{transform_indices = @transform_0, window_bounds = array<i64: 4, 49>}, {transform_indices = @transform_1, window_bounds = array<i64: 4>}, {transform_indices = @transform_2, window_bounds = array<i64: 1, 1, 16, 16>}, {transform_indices = @transform_3, window_bounds = array<i64: 1, 1, 16, 16>}]} {
    %cst = arith.constant 0.000000e+00 : f32
    %0 = vector.broadcast %cst : f32 to vector<22x22xf32>
    %c0 = arith.constant 0 : index
    %c0_0 = arith.constant 0 : index
    %1 = vector.load %arg6[%c0, %c0_0] : memref<22x22xf32, #tpu.memory_space<vmem>>, vector<22x22xf32>
    tpu.vector_store %arg6[%c0, %c0_0], %0 {strides = array<i32>} : memref<22x22xf32, #tpu.memory_space<vmem>>, vector<22x22xf32>,
    %c0_1 = arith.constant 0 : index
    %c0_2 = arith.constant 0 : index
    %c0_3 = arith.constant 0 : index
    %c0_4 = arith.constant 0 : index
    %2 = vector.load %arg4[%c0_1, %c0_2, %c0_3, %c0_4] : memref<1x1x16x16xf32, #tpu.memory_space<vmem>>, vector<1x1x16x16xf32>
    %3 = vector.shape_cast %2 : vector<1x1x16x16xf32> to vector<16x16xf32>
    %c3 = arith.constant 3 : index
    %c3_5 = arith.constant 3 : index
    %4 = vector.load %arg6[%c3, %c3_5] : memref<22x22xf32, #tpu.memory_space<vmem>>, vector<16x16xf32>
    tpu.vector_store %arg6[%c3, %c3_5], %3 {strides = array<i32>} : memref<22x22xf32, #tpu.memory_space<vmem>>, vector<16x16xf32>,
    %c0_6 = arith.constant 0 : index
    %c0_7 = arith.constant 0 : index
    %5 = vector.load %arg6[%c0_6, %c0_7] : memref<22x22xf32, #tpu.memory_space<vmem>>, vector<22x22xf32>
    %cst_8 = arith.constant 0.000000e+00 : f32
    %6 = vector.broadcast %cst_8 : f32 to vector<16x16xf32>
    %7 = vector.extract_strided_slice %5 {offsets = [0, 0], sizes = [16, 16], strides = [1, 1]} : vector<22x22xf32> to vector<16x16xf32>
    %8 = arith.index_cast %arg1 : i32 to index
    %c0_9 = arith.constant 0 : index
    %9 = memref.load %arg2[%8, %c0_9] : memref<4x49xf32, #tpu.memory_space<smem>>
    %10 = vector.broadcast %9 : f32 to vector<16x16xf32>
    %11 = arith.mulf %7, %10 : vector<16x16xf32>
    %12 = arith.addf %6, %11 : vector<16x16xf32>
    %13 = vector.extract_strided_slice %5 {offsets = [0, 1], sizes = [16, 16], strides = [1, 1]} : vector<22x22xf32> to vector<16x16xf32>
    %14 = arith.index_cast %arg1 : i32 to index
    %c1 = arith.constant 1 : index
    %15 = memref.load %arg2[%14, %c1] : memref<4x49xf32, #tpu.memory_space<smem>>
    %16 = vector.broadcast %15 : f32 to vector<16x16xf32>
    %17 = arith.mulf %13, %16 : vector<16x16xf32>
    %18 = arith.addf %12, %17 : vector<16x16xf32>
    %19 = vector.extract_strided_slice %5 {offsets = [0, 2], sizes = [16, 16], strides = [1, 1]} : vector<22x22xf32> to vector<16x16xf32>
    %20 = arith.index_cast %arg1 : i32 to index
    %c2 = arith.constant 2 : index
    %21 = memref.load %arg2[%20, %c2] : memref<4x49xf32, #tpu.memory_space<smem>>
    %22 = vector.broadcast %21 : f32 to vector<16x16xf32>
    %23 = arith.mulf %19, %22 : vector<16x16xf32>
    %24 = arith.addf %18, %23 : vector<16x16xf32>
    %25 = vector.extract_strided_slice %5 {offsets = [0, 3], sizes = [16, 16], strides = [1, 1]} : vector<22x22xf32> to vector<16x16xf32>
    %26 = arith.index_cast %arg1 : i32 to index
    %c3_10 = arith.constant 3 : index
    %27 = memref.load %arg2[%26, %c3_10] : memref<4x49xf32, #tpu.memory_space<smem>>
    %28 = vector.broadcast %27 : f32 to vector<16x16xf32>
    %29 = arith.mulf %25, %28 : vector<16x16xf32>
    %30 = arith.addf %24, %29 : vector<16x16xf32>
    %31 = vector.extract_strided_slice %5 {offsets = [0, 4], sizes = [16, 16], strides = [1, 1]} : vector<22x22xf32> to vector<16x16xf32>
    %32 = arith.index_cast %arg1 : i32 to index
    %c4 = arith.constant 4 : index
    %33 = memref.load %arg2[%32, %c4] : memref<4x49xf32, #tpu.memory_space<smem>>
    %34 = vector.broadcast %33 : f32 to vector<16x16xf32>
    %35 = arith.mulf %31, %34 : vector<16x16xf32>
    %36 = arith.addf %30, %35 : vector<16x16xf32>
    %37 = vector.extract_strided_slice %5 {offsets = [0, 5], sizes = [16, 16], strides = [1, 1]} : vector<22x22xf32> to vector<16x16xf32>
    %38 = arith.index_cast %arg1 : i32 to index
    %c5 = arith.constant 5 : index
    %39 = memref.load %arg2[%38, %c5] : memref<4x49xf32, #tpu.memory_space<smem>>
    %40 = vector.broadcast %39 : f32 to vector<16x16xf32>
    %41 = arith.mulf %37, %40 : vector<16x16xf32>
    %42 = arith.addf %36, %41 : vector<16x16xf32>
    %43 = vector.extract_strided_slice %5 {offsets = [0, 6], sizes = [16, 16], strides = [1, 1]} : vector<22x22xf32> to vector<16x16xf32>
    %44 = arith.index_cast %arg1 : i32 to index
    %c6 = arith.constant 6 : index
    %45 = memref.load %arg2[%44, %c6] : memref<4x49xf32, #tpu.memory_space<smem>>
    %46 = vector.broadcast %45 : f32 to vector<16x16xf32>
    %47 = arith.mulf %43, %46 : vector<16x16xf32>
    %48 = arith.addf %42, %47 : vector<16x16xf32>
    %49 = vector.extract_strided_slice %5 {offsets = [1, 0], sizes = [16, 16], strides = [1, 1]} : vector<22x22xf32> to vector<16x16xf32>
    %50 = arith.index_cast %arg1 : i32 to index
    %c7 = arith.constant 7 : index
    %51 = memref.load %arg2[%50, %c7] : memref<4x49xf32, #tpu.memory_space<smem>>
    %52 = vector.broadcast %51 : f32 to vector<16x16xf32>
    %53 = arith.mulf %49, %52 : vector<16x16xf32>
    %54 = arith.addf %48, %53 : vector<16x16xf32>
    %55 = vector.extract_strided_slice %5 {offsets = [1, 1], sizes = [16, 16], strides = [1, 1]} : vector<22x22xf32> to vector<16x16xf32>
    %56 = arith.index_cast %arg1 : i32 to index
    %c8 = arith.constant 8 : index
    %57 = memref.load %arg2[%56, %c8] : memref<4x49xf32, #tpu.memory_space<smem>>
    %58 = vector.broadcast %57 : f32 to vector<16x16xf32>
    %59 = arith.mulf %55, %58 : vector<16x16xf32>
    %60 = arith.addf %54, %59 : vector<16x16xf32>
    %61 = vector.extract_strided_slice %5 {offsets = [1, 2], sizes = [16, 16], strides = [1, 1]} : vector<22x22xf32> to vector<16x16xf32>
    %62 = arith.index_cast %arg1 : i32 to index
    %c9 = arith.constant 9 : index
    %63 = memref.load %arg2[%62, %c9] : memref<4x49xf32, #tpu.memory_space<smem>>
    %64 = vector.broadcast %63 : f32 to vector<16x16xf32>
    %65 = arith.mulf %61, %64 : vector<16x16xf32>
    %66 = arith.addf %60, %65 : vector<16x16xf32>
    %67 = vector.extract_strided_slice %5 {offsets = [1, 3], sizes = [16, 16], strides = [1, 1]} : vector<22x22xf32> to vector<16x16xf32>
    %68 = arith.index_cast %arg1 : i32 to index
    %c10 = arith.constant 10 : index
    %69 = memref.load %arg2[%68, %c10] : memref<4x49xf32, #tpu.memory_space<smem>>
    %70 = vector.broadcast %69 : f32 to vector<16x16xf32>
    %71 = arith.mulf %67, %70 : vector<16x16xf32>
    %72 = arith.addf %66, %71 : vector<16x16xf32>
    %73 = vector.extract_strided_slice %5 {offsets = [1, 4], sizes = [16, 16], strides = [1, 1]} : vector<22x22xf32> to vector<16x16xf32>
    %74 = arith.index_cast %arg1 : i32 to index
    %c11 = arith.constant 11 : index
    %75 = memref.load %arg2[%74, %c11] : memref<4x49xf32, #tpu.memory_space<smem>>
    %76 = vector.broadcast %75 : f32 to vector<16x16xf32>
    %77 = arith.mulf %73, %76 : vector<16x16xf32>
    %78 = arith.addf %72, %77 : vector<16x16xf32>
    %79 = vector.extract_strided_slice %5 {offsets = [1, 5], sizes = [16, 16], strides = [1, 1]} : vector<22x22xf32> to vector<16x16xf32>
    %80 = arith.index_cast %arg1 : i32 to index
    %c12 = arith.constant 12 : index
    %81 = memref.load %arg2[%80, %c12] : memref<4x49xf32, #tpu.memory_space<smem>>
    %82 = vector.broadcast %81 : f32 to vector<16x16xf32>
    %83 = arith.mulf %79, %82 : vector<16x16xf32>
    %84 = arith.addf %78, %83 : vector<16x16xf32>
    %85 = vector.extract_strided_slice %5 {offsets = [1, 6], sizes = [16, 16], strides = [1, 1]} : vector<22x22xf32> to vector<16x16xf32>
    %86 = arith.index_cast %arg1 : i32 to index
    %c13 = arith.constant 13 : index
    %87 = memref.load %arg2[%86, %c13] : memref<4x49xf32, #tpu.memory_space<smem>>
    %88 = vector.broadcast %87 : f32 to vector<16x16xf32>
    %89 = arith.mulf %85, %88 : vector<16x16xf32>
    %90 = arith.addf %84, %89 : vector<16x16xf32>
    %91 = vector.extract_strided_slice %5 {offsets = [2, 0], sizes = [16, 16], strides = [1, 1]} : vector<22x22xf32> to vector<16x16xf32>
    %92 = arith.index_cast %arg1 : i32 to index
    %c14 = arith.constant 14 : index
    %93 = memref.load %arg2[%92, %c14] : memref<4x49xf32, #tpu.memory_space<smem>>
    %94 = vector.broadcast %93 : f32 to vector<16x16xf32>
    %95 = arith.mulf %91, %94 : vector<16x16xf32>
    %96 = arith.addf %90, %95 : vector<16x16xf32>
    %97 = vector.extract_strided_slice %5 {offsets = [2, 1], sizes = [16, 16], strides = [1, 1]} : vector<22x22xf32> to vector<16x16xf32>
    %98 = arith.index_cast %arg1 : i32 to index
    %c15 = arith.constant 15 : index
    %99 = memref.load %arg2[%98, %c15] : memref<4x49xf32, #tpu.memory_space<smem>>
    %100 = vector.broadcast %99 : f32 to vector<16x16xf32>
    %101 = arith.mulf %97, %100 : vector<16x16xf32>
    %102 = arith.addf %96, %101 : vector<16x16xf32>
    %103 = vector.extract_strided_slice %5 {offsets = [2, 2], sizes = [16, 16], strides = [1, 1]} : vector<22x22xf32> to vector<16x16xf32>
    %104 = arith.index_cast %arg1 : i32 to index
    %c16 = arith.constant 16 : index
    %105 = memref.load %arg2[%104, %c16] : memref<4x49xf32, #tpu.memory_space<smem>>
    %106 = vector.broadcast %105 : f32 to vector<16x16xf32>
    %107 = arith.mulf %103, %106 : vector<16x16xf32>
    %108 = arith.addf %102, %107 : vector<16x16xf32>
    %109 = vector.extract_strided_slice %5 {offsets = [2, 3], sizes = [16, 16], strides = [1, 1]} : vector<22x22xf32> to vector<16x16xf32>
    %110 = arith.index_cast %arg1 : i32 to index
    %c17 = arith.constant 17 : index
    %111 = memref.load %arg2[%110, %c17] : memref<4x49xf32, #tpu.memory_space<smem>>
    %112 = vector.broadcast %111 : f32 to vector<16x16xf32>
    %113 = arith.mulf %109, %112 : vector<16x16xf32>
    %114 = arith.addf %108, %113 : vector<16x16xf32>
    %115 = vector.extract_strided_slice %5 {offsets = [2, 4], sizes = [16, 16], strides = [1, 1]} : vector<22x22xf32> to vector<16x16xf32>
    %116 = arith.index_cast %arg1 : i32 to index
    %c18 = arith.constant 18 : index
    %117 = memref.load %arg2[%116, %c18] : memref<4x49xf32, #tpu.memory_space<smem>>
    %118 = vector.broadcast %117 : f32 to vector<16x16xf32>
    %119 = arith.mulf %115, %118 : vector<16x16xf32>
    %120 = arith.addf %114, %119 : vector<16x16xf32>
    %121 = vector.extract_strided_slice %5 {offsets = [2, 5], sizes = [16, 16], strides = [1, 1]} : vector<22x22xf32> to vector<16x16xf32>
    %122 = arith.index_cast %arg1 : i32 to index
    %c19 = arith.constant 19 : index
    %123 = memref.load %arg2[%122, %c19] : memref<4x49xf32, #tpu.memory_space<smem>>
    %124 = vector.broadcast %123 : f32 to vector<16x16xf32>
    %125 = arith.mulf %121, %124 : vector<16x16xf32>
    %126 = arith.addf %120, %125 : vector<16x16xf32>
    %127 = vector.extract_strided_slice %5 {offsets = [2, 6], sizes = [16, 16], strides = [1, 1]} : vector<22x22xf32> to vector<16x16xf32>
    %128 = arith.index_cast %arg1 : i32 to index
    %c20 = arith.constant 20 : index
    %129 = memref.load %arg2[%128, %c20] : memref<4x49xf32, #tpu.memory_space<smem>>
    %130 = vector.broadcast %129 : f32 to vector<16x16xf32>
    %131 = arith.mulf %127, %130 : vector<16x16xf32>
    %132 = arith.addf %126, %131 : vector<16x16xf32>
    %133 = vector.extract_strided_slice %5 {offsets = [3, 0], sizes = [16, 16], strides = [1, 1]} : vector<22x22xf32> to vector<16x16xf32>
    %134 = arith.index_cast %arg1 : i32 to index
    %c21 = arith.constant 21 : index
    %135 = memref.load %arg2[%134, %c21] : memref<4x49xf32, #tpu.memory_space<smem>>
    %136 = vector.broadcast %135 : f32 to vector<16x16xf32>
    %137 = arith.mulf %133, %136 : vector<16x16xf32>
    %138 = arith.addf %132, %137 : vector<16x16xf32>
    %139 = vector.extract_strided_slice %5 {offsets = [3, 1], sizes = [16, 16], strides = [1, 1]} : vector<22x22xf32> to vector<16x16xf32>
    %140 = arith.index_cast %arg1 : i32 to index
    %c22 = arith.constant 22 : index
    %141 = memref.load %arg2[%140, %c22] : memref<4x49xf32, #tpu.memory_space<smem>>
    %142 = vector.broadcast %141 : f32 to vector<16x16xf32>
    %143 = arith.mulf %139, %142 : vector<16x16xf32>
    %144 = arith.addf %138, %143 : vector<16x16xf32>
    %145 = vector.extract_strided_slice %5 {offsets = [3, 2], sizes = [16, 16], strides = [1, 1]} : vector<22x22xf32> to vector<16x16xf32>
    %146 = arith.index_cast %arg1 : i32 to index
    %c23 = arith.constant 23 : index
    %147 = memref.load %arg2[%146, %c23] : memref<4x49xf32, #tpu.memory_space<smem>>
    %148 = vector.broadcast %147 : f32 to vector<16x16xf32>
    %149 = arith.mulf %145, %148 : vector<16x16xf32>
    %150 = arith.addf %144, %149 : vector<16x16xf32>
    %151 = vector.extract_strided_slice %5 {offsets = [3, 3], sizes = [16, 16], strides = [1, 1]} : vector<22x22xf32> to vector<16x16xf32>
    %152 = arith.index_cast %arg1 : i32 to index
    %c24 = arith.constant 24 : index
    %153 = memref.load %arg2[%152, %c24] : memref<4x49xf32, #tpu.memory_space<smem>>
    %154 = vector.broadcast %153 : f32 to vector<16x16xf32>
    %155 = arith.mulf %151, %154 : vector<16x16xf32>
    %156 = arith.addf %150, %155 : vector<16x16xf32>
    %157 = vector.extract_strided_slice %5 {offsets = [3, 4], sizes = [16, 16], strides = [1, 1]} : vector<22x22xf32> to vector<16x16xf32>
    %158 = arith.index_cast %arg1 : i32 to index
    %c25 = arith.constant 25 : index
    %159 = memref.load %arg2[%158, %c25] : memref<4x49xf32, #tpu.memory_space<smem>>
    %160 = vector.broadcast %159 : f32 to vector<16x16xf32>
    %161 = arith.mulf %157, %160 : vector<16x16xf32>
    %162 = arith.addf %156, %161 : vector<16x16xf32>
    %163 = vector.extract_strided_slice %5 {offsets = [3, 5], sizes = [16, 16], strides = [1, 1]} : vector<22x22xf32> to vector<16x16xf32>
    %164 = arith.index_cast %arg1 : i32 to index
    %c26 = arith.constant 26 : index
    %165 = memref.load %arg2[%164, %c26] : memref<4x49xf32, #tpu.memory_space<smem>>
    %166 = vector.broadcast %165 : f32 to vector<16x16xf32>
    %167 = arith.mulf %163, %166 : vector<16x16xf32>
    %168 = arith.addf %162, %167 : vector<16x16xf32>
    %169 = vector.extract_strided_slice %5 {offsets = [3, 6], sizes = [16, 16], strides = [1, 1]} : vector<22x22xf32> to vector<16x16xf32>
    %170 = arith.index_cast %arg1 : i32 to index
    %c27 = arith.constant 27 : index
    %171 = memref.load %arg2[%170, %c27] : memref<4x49xf32, #tpu.memory_space<smem>>
    %172 = vector.broadcast %171 : f32 to vector<16x16xf32>
    %173 = arith.mulf %169, %172 : vector<16x16xf32>
    %174 = arith.addf %168, %173 : vector<16x16xf32>
    %175 = vector.extract_strided_slice %5 {offsets = [4, 0], sizes = [16, 16], strides = [1, 1]} : vector<22x22xf32> to vector<16x16xf32>
    %176 = arith.index_cast %arg1 : i32 to index
    %c28 = arith.constant 28 : index
    %177 = memref.load %arg2[%176, %c28] : memref<4x49xf32, #tpu.memory_space<smem>>
    %178 = vector.broadcast %177 : f32 to vector<16x16xf32>
    %179 = arith.mulf %175, %178 : vector<16x16xf32>
    %180 = arith.addf %174, %179 : vector<16x16xf32>
    %181 = vector.extract_strided_slice %5 {offsets = [4, 1], sizes = [16, 16], strides = [1, 1]} : vector<22x22xf32> to vector<16x16xf32>
    %182 = arith.index_cast %arg1 : i32 to index
    %c29 = arith.constant 29 : index
    %183 = memref.load %arg2[%182, %c29] : memref<4x49xf32, #tpu.memory_space<smem>>
    %184 = vector.broadcast %183 : f32 to vector<16x16xf32>
    %185 = arith.mulf %181, %184 : vector<16x16xf32>
    %186 = arith.addf %180, %185 : vector<16x16xf32>
    %187 = vector.extract_strided_slice %5 {offsets = [4, 2], sizes = [16, 16], strides = [1, 1]} : vector<22x22xf32> to vector<16x16xf32>
    %188 = arith.index_cast %arg1 : i32 to index
    %c30 = arith.constant 30 : index
    %189 = memref.load %arg2[%188, %c30] : memref<4x49xf32, #tpu.memory_space<smem>>
    %190 = vector.broadcast %189 : f32 to vector<16x16xf32>
    %191 = arith.mulf %187, %190 : vector<16x16xf32>
    %192 = arith.addf %186, %191 : vector<16x16xf32>
    %193 = vector.extract_strided_slice %5 {offsets = [4, 3], sizes = [16, 16], strides = [1, 1]} : vector<22x22xf32> to vector<16x16xf32>
    %194 = arith.index_cast %arg1 : i32 to index
    %c31 = arith.constant 31 : index
    %195 = memref.load %arg2[%194, %c31] : memref<4x49xf32, #tpu.memory_space<smem>>
    %196 = vector.broadcast %195 : f32 to vector<16x16xf32>
    %197 = arith.mulf %193, %196 : vector<16x16xf32>
    %198 = arith.addf %192, %197 : vector<16x16xf32>
    %199 = vector.extract_strided_slice %5 {offsets = [4, 4], sizes = [16, 16], strides = [1, 1]} : vector<22x22xf32> to vector<16x16xf32>
    %200 = arith.index_cast %arg1 : i32 to index
    %c32 = arith.constant 32 : index
    %201 = memref.load %arg2[%200, %c32] : memref<4x49xf32, #tpu.memory_space<smem>>
    %202 = vector.broadcast %201 : f32 to vector<16x16xf32>
    %203 = arith.mulf %199, %202 : vector<16x16xf32>
    %204 = arith.addf %198, %203 : vector<16x16xf32>
    %205 = vector.extract_strided_slice %5 {offsets = [4, 5], sizes = [16, 16], strides = [1, 1]} : vector<22x22xf32> to vector<16x16xf32>
    %206 = arith.index_cast %arg1 : i32 to index
    %c33 = arith.constant 33 : index
    %207 = memref.load %arg2[%206, %c33] : memref<4x49xf32, #tpu.memory_space<smem>>
    %208 = vector.broadcast %207 : f32 to vector<16x16xf32>
    %209 = arith.mulf %205, %208 : vector<16x16xf32>
    %210 = arith.addf %204, %209 : vector<16x16xf32>
    %211 = vector.extract_strided_slice %5 {offsets = [4, 6], sizes = [16, 16], strides = [1, 1]} : vector<22x22xf32> to vector<16x16xf32>
    %212 = arith.index_cast %arg1 : i32 to index
    %c34 = arith.constant 34 : index
    %213 = memref.load %arg2[%212, %c34] : memref<4x49xf32, #tpu.memory_space<smem>>
    %214 = vector.broadcast %213 : f32 to vector<16x16xf32>
    %215 = arith.mulf %211, %214 : vector<16x16xf32>
    %216 = arith.addf %210, %215 : vector<16x16xf32>
    %217 = vector.extract_strided_slice %5 {offsets = [5, 0], sizes = [16, 16], strides = [1, 1]} : vector<22x22xf32> to vector<16x16xf32>
    %218 = arith.index_cast %arg1 : i32 to index
    %c35 = arith.constant 35 : index
    %219 = memref.load %arg2[%218, %c35] : memref<4x49xf32, #tpu.memory_space<smem>>
    %220 = vector.broadcast %219 : f32 to vector<16x16xf32>
    %221 = arith.mulf %217, %220 : vector<16x16xf32>
    %222 = arith.addf %216, %221 : vector<16x16xf32>
    %223 = vector.extract_strided_slice %5 {offsets = [5, 1], sizes = [16, 16], strides = [1, 1]} : vector<22x22xf32> to vector<16x16xf32>
    %224 = arith.index_cast %arg1 : i32 to index
    %c36 = arith.constant 36 : index
    %225 = memref.load %arg2[%224, %c36] : memref<4x49xf32, #tpu.memory_space<smem>>
    %226 = vector.broadcast %225 : f32 to vector<16x16xf32>
    %227 = arith.mulf %223, %226 : vector<16x16xf32>
    %228 = arith.addf %222, %227 : vector<16x16xf32>
    %229 = vector.extract_strided_slice %5 {offsets = [5, 2], sizes = [16, 16], strides = [1, 1]} : vector<22x22xf32> to vector<16x16xf32>
    %230 = arith.index_cast %arg1 : i32 to index
    %c37 = arith.constant 37 : index
    %231 = memref.load %arg2[%230, %c37] : memref<4x49xf32, #tpu.memory_space<smem>>
    %232 = vector.broadcast %231 : f32 to vector<16x16xf32>
    %233 = arith.mulf %229, %232 : vector<16x16xf32>
    %234 = arith.addf %228, %233 : vector<16x16xf32>
    %235 = vector.extract_strided_slice %5 {offsets = [5, 3], sizes = [16, 16], strides = [1, 1]} : vector<22x22xf32> to vector<16x16xf32>
    %236 = arith.index_cast %arg1 : i32 to index
    %c38 = arith.constant 38 : index
    %237 = memref.load %arg2[%236, %c38] : memref<4x49xf32, #tpu.memory_space<smem>>
    %238 = vector.broadcast %237 : f32 to vector<16x16xf32>
    %239 = arith.mulf %235, %238 : vector<16x16xf32>
    %240 = arith.addf %234, %239 : vector<16x16xf32>
    %241 = vector.extract_strided_slice %5 {offsets = [5, 4], sizes = [16, 16], strides = [1, 1]} : vector<22x22xf32> to vector<16x16xf32>
    %242 = arith.index_cast %arg1 : i32 to index
    %c39 = arith.constant 39 : index
    %243 = memref.load %arg2[%242, %c39] : memref<4x49xf32, #tpu.memory_space<smem>>
    %244 = vector.broadcast %243 : f32 to vector<16x16xf32>
    %245 = arith.mulf %241, %244 : vector<16x16xf32>
    %246 = arith.addf %240, %245 : vector<16x16xf32>
    %247 = vector.extract_strided_slice %5 {offsets = [5, 5], sizes = [16, 16], strides = [1, 1]} : vector<22x22xf32> to vector<16x16xf32>
    %248 = arith.index_cast %arg1 : i32 to index
    %c40 = arith.constant 40 : index
    %249 = memref.load %arg2[%248, %c40] : memref<4x49xf32, #tpu.memory_space<smem>>
    %250 = vector.broadcast %249 : f32 to vector<16x16xf32>
    %251 = arith.mulf %247, %250 : vector<16x16xf32>
    %252 = arith.addf %246, %251 : vector<16x16xf32>
    %253 = vector.extract_strided_slice %5 {offsets = [5, 6], sizes = [16, 16], strides = [1, 1]} : vector<22x22xf32> to vector<16x16xf32>
    %254 = arith.index_cast %arg1 : i32 to index
    %c41 = arith.constant 41 : index
    %255 = memref.load %arg2[%254, %c41] : memref<4x49xf32, #tpu.memory_space<smem>>
    %256 = vector.broadcast %255 : f32 to vector<16x16xf32>
    %257 = arith.mulf %253, %256 : vector<16x16xf32>
    %258 = arith.addf %252, %257 : vector<16x16xf32>
    %259 = vector.extract_strided_slice %5 {offsets = [6, 0], sizes = [16, 16], strides = [1, 1]} : vector<22x22xf32> to vector<16x16xf32>
    %260 = arith.index_cast %arg1 : i32 to index
    %c42 = arith.constant 42 : index
    %261 = memref.load %arg2[%260, %c42] : memref<4x49xf32, #tpu.memory_space<smem>>
    %262 = vector.broadcast %261 : f32 to vector<16x16xf32>
    %263 = arith.mulf %259, %262 : vector<16x16xf32>
    %264 = arith.addf %258, %263 : vector<16x16xf32>
    %265 = vector.extract_strided_slice %5 {offsets = [6, 1], sizes = [16, 16], strides = [1, 1]} : vector<22x22xf32> to vector<16x16xf32>
    %266 = arith.index_cast %arg1 : i32 to index
    %c43 = arith.constant 43 : index
    %267 = memref.load %arg2[%266, %c43] : memref<4x49xf32, #tpu.memory_space<smem>>
    %268 = vector.broadcast %267 : f32 to vector<16x16xf32>
    %269 = arith.mulf %265, %268 : vector<16x16xf32>
    %270 = arith.addf %264, %269 : vector<16x16xf32>
    %271 = vector.extract_strided_slice %5 {offsets = [6, 2], sizes = [16, 16], strides = [1, 1]} : vector<22x22xf32> to vector<16x16xf32>
    %272 = arith.index_cast %arg1 : i32 to index
    %c44 = arith.constant 44 : index
    %273 = memref.load %arg2[%272, %c44] : memref<4x49xf32, #tpu.memory_space<smem>>
    %274 = vector.broadcast %273 : f32 to vector<16x16xf32>
    %275 = arith.mulf %271, %274 : vector<16x16xf32>
    %276 = arith.addf %270, %275 : vector<16x16xf32>
    %277 = vector.extract_strided_slice %5 {offsets = [6, 3], sizes = [16, 16], strides = [1, 1]} : vector<22x22xf32> to vector<16x16xf32>
    %278 = arith.index_cast %arg1 : i32 to index
    %c45 = arith.constant 45 : index
    %279 = memref.load %arg2[%278, %c45] : memref<4x49xf32, #tpu.memory_space<smem>>
    %280 = vector.broadcast %279 : f32 to vector<16x16xf32>
    %281 = arith.mulf %277, %280 : vector<16x16xf32>
    %282 = arith.addf %276, %281 : vector<16x16xf32>
    %283 = vector.extract_strided_slice %5 {offsets = [6, 4], sizes = [16, 16], strides = [1, 1]} : vector<22x22xf32> to vector<16x16xf32>
    %284 = arith.index_cast %arg1 : i32 to index
    %c46 = arith.constant 46 : index
    %285 = memref.load %arg2[%284, %c46] : memref<4x49xf32, #tpu.memory_space<smem>>
    %286 = vector.broadcast %285 : f32 to vector<16x16xf32>
    %287 = arith.mulf %283, %286 : vector<16x16xf32>
    %288 = arith.addf %282, %287 : vector<16x16xf32>
    %289 = vector.extract_strided_slice %5 {offsets = [6, 5], sizes = [16, 16], strides = [1, 1]} : vector<22x22xf32> to vector<16x16xf32>
    %290 = arith.index_cast %arg1 : i32 to index
    %c47 = arith.constant 47 : index
    %291 = memref.load %arg2[%290, %c47] : memref<4x49xf32, #tpu.memory_space<smem>>
    %292 = vector.broadcast %291 : f32 to vector<16x16xf32>
    %293 = arith.mulf %289, %292 : vector<16x16xf32>
    %294 = arith.addf %288, %293 : vector<16x16xf32>
    %295 = vector.extract_strided_slice %5 {offsets = [6, 6], sizes = [16, 16], strides = [1, 1]} : vector<22x22xf32> to vector<16x16xf32>
    %296 = arith.index_cast %arg1 : i32 to index
    %c48 = arith.constant 48 : index
    %297 = memref.load %arg2[%296, %c48] : memref<4x49xf32, #tpu.memory_space<smem>>
    %298 = vector.broadcast %297 : f32 to vector<16x16xf32>
    %299 = arith.mulf %295, %298 : vector<16x16xf32>
    %300 = arith.addf %294, %299 : vector<16x16xf32>
    %301 = arith.index_cast %arg1 : i32 to index
    %302 = memref.load %arg3[%301] : memref<4xf32, #tpu.memory_space<smem>>
    %303 = vector.broadcast %302 : f32 to vector<16x16xf32>
    %304 = arith.addf %300, %303 : vector<16x16xf32>
    %c0_11 = arith.constant 0 : index
    %c0_12 = arith.constant 0 : index
    %c0_13 = arith.constant 0 : index
    %c0_14 = arith.constant 0 : index
    %305 = vector.load %arg5[%c0_11, %c0_12, %c0_13, %c0_14] : memref<1x1x16x16xf32, #tpu.memory_space<vmem>>, vector<1x1x16x16xf32>
    %306 = vector.shape_cast %305 : vector<1x1x16x16xf32> to vector<16x16xf32>
    %307 = vector.shape_cast %304 : vector<16x16xf32> to vector<1x1x16x16xf32>
    tpu.vector_store %arg5[%c0_11, %c0_12, %c0_13, %c0_14], %307 {strides = array<i32>} : memref<1x1x16x16xf32, #tpu.memory_space<vmem>>, vector<1x1x16x16xf32>,
    return
  }
  func.func @transform_0(%arg0: i32, %arg1: i32) -> (i32, i32) {
    %c0_i32 = arith.constant 0 : i32
    %c0_i32_0 = arith.constant 0 : i32
    %c0_i32_1 = arith.constant 0 : i32
    return %c0_i32, %c0_i32_0 : i32, i32
  }
  func.func @transform_1(%arg0: i32, %arg1: i32) -> i32 {
    %c0_i32 = arith.constant 0 : i32
    %c0_i32_0 = arith.constant 0 : i32
    return %c0_i32 : i32
  }
  func.func @transform_2(%arg0: i32, %arg1: i32) -> (i32, i32, i32, i32) {
    %c0_i32 = arith.constant 0 : i32
    %c0_i32_0 = arith.constant 0 : i32
    %c0_i32_1 = arith.constant 0 : i32
    return %arg0, %arg1, %c0_i32, %c0_i32_0 : i32, i32, i32, i32
  }
  func.func @transform_3(%arg0: i32, %arg1: i32) -> (i32, i32, i32, i32) {
    %c0_i32 = arith.constant 0 : i32
    %c0_i32_0 = arith.constant 0 : i32
    %c0_i32_1 = arith.constant 0 : i32
    return %arg0, %arg1, %c0_i32, %c0_i32_0 : i32, i32, i32, i32
  }
}

</mosaic_0001>

<llo_original>
// kernel: tpu_custom_call.1
$region0: #{tpu_custom_call.1}
  #allocation0 [shape = 'u32[]', space=smem, size = 0x4, offset = 0x4, fixed_abs, tag = 'smem constant byte address 0x4 - core index']
  #allocation1 [shape = 'u32[144,128]{1,0:T(1,128)}', space=vmem, size = 0x12000, scoped, tag = 'internal scratch']
  #allocation2 [shape = 'f32[22,22]{1,0:T(8,128)}', space=vmem, size = 0x3000, scoped, tag = 'scratch operand']
  %s0 = inlined_call_operand.hbm [shape: f32[4,49], index: 0, kind: input, shape index: {}]
  %s1 = inlined_call_operand.vmem [shape: f32[4], index: 1, kind: input, shape index: {}]
  %s2 = inlined_call_operand.hbm [shape: f32[2,4,16,16], index: 2, kind: input, shape index: {}]
  %s3 = inlined_call_operand.hbm [shape: f32[2,4,16,16], index: 3, kind: output, shape index: {}]
  %s4 = sld [smem:[#allocation0]]
  $region57: #{tpu_custom_call.1} parent=0
    _
  %s6 = ssub.s32 1, %s4
  %s7 = scalar_select 0, %s6, %s4
  $region1: #{tpu_custom_call.1} parent=0
    #allocation3 [shape = 'u8[2048]{0}', space=smem, size = 0x800, scoped, tag = 'input window, operand 0, single buffered']
    #allocation4 [shape = 's32[2]{0}', space=sflag, size = 0x8, scoped, tag = 'scoped memory for tpu_custom_call.1']
    #allocation5 [shape = 's32[2]{0}', space=sflag, size = 0x8, scoped, tag = 'scoped memory for tpu_custom_call.1']
    #allocation6 [shape = 's32[2]{0}', space=sflag, size = 0x8, scoped, tag = 'scoped memory for tpu_custom_call.1']
    #allocation7 [shape = 's32[2]{0}', space=sflag, size = 0x8, scoped, tag = 'scoped memory for tpu_custom_call.1']
    #allocation8 [shape = 'u8[512]{0}', space=smem, size = 0x200, scoped, tag = 'input window, operand 1, single buffered']
    #allocation9 [shape = 'u8[16384]{0}', space=vmem, size = 0x4000, scoped, tag = 'input window, operand 2']
    #allocation10 [shape = 'u8[16384]{0}', space=vmem, size = 0x4000, scoped, tag = 'output window, operand 0']
    %8 = vsyncpa [#allocation6], 0
    %9 = vsyncpa [#allocation7], 0
    %10 = vsyncpa [#allocation4], 0
    %s11 = scalar_lea.sflag [#allocation4], 1
    %12 = vsyncpa %s11, 0
    %13 = vsyncpa [#allocation5], 0
    %s14 = scalar_lea.sflag [#allocation5], 1
    %15 = vsyncpa %s14, 0
    loop: start=0, step=1, limit=10
    $region2: #{tpu_custom_call.1} parent=1 // loop_pre_header
      _
    $region3: #{tpu_custom_call.1} parent=1 // loop_header
      %s17 = sphi 0, %s21
      %p18 = scmp.ge.s32.totalorder %s17, 10
      %s24 = sphi 0, %s36
      %s25 = sphi 0, %s32
      %s26 = sphi 0, %s24
      %s27 = sphi 0, %s25
      %s28 = sphi 0, %s26
      %s29 = sphi 0, %s27
      %s37 = sphi 0, %s37
      %s39 = sphi 0, %s37
      %s40 = sphi 0, %s39
      %s54 = sphi 0, %s40
      %s58 = sphi 0, %s58
      %s60 = sphi 0, %s58
      %s61 = sphi 0, %s60
      %s75 = sphi 0, %s61
      %s83 = sphi 0, %s85
      %s86 = sphi 0, %s83
      %s87 = sphi 0, %s86
      %s103 = sphi 0, %s87
      %s111 = sphi 0, %s113
      %s114 = sphi 0, %s111
      %s115 = sphi 0, %s114
      %s131 = sphi 0, %s115
    $region4: #{tpu_custom_call.1} parent=1 // loop_header_branch
      %20 = sbr.rel (%p18) target = $region8
    $region5: #{tpu_custom_call.1} parent=1 // loop_body
      %s22 = ssub.s32 %s17, 1
      %s23 = ssub.s32 %s17, 2
      %s30 = sadd.s32 1, %s25
      %p31 = scmp.ge.s32.totalorder %s30, 4
      %s32 = scalar_select %p31, 0, %s30
      %s33 = sadd.s32 1, %s24
      %s34 = scalar_select %p31, %s33, %s24
      %p35 = scmp.ge.s32.totalorder %s34, 2
      %s36 = scalar_select %p35, 0, %s34
      %s38 = sadd.s32 %s37, 1
      %p41 = scmp.eq.s32.totalorder %s17, 7
      %p42 = scmp.ne.s32.totalorder %s37, %s39
      %p43 = scmp.eq.s32.totalorder %s17, 0
      %p44 = por %p42, %p43
      %p45 = scmp.ne.s32.totalorder %s37, %s39
      %p46 = scmp.eq.s32.totalorder %s22, 7
      %p47 = por %p45, %p46
      %p48 = scmp.ne.s32.totalorder %s39, %s40
      %p49 = scmp.eq.s32.totalorder %s22, 0
      %p50 = por %p48, %p49
      %p51 = scmp.ne.s32.totalorder %s39, %s40
      %p52 = scmp.eq.s32.totalorder %s23, 7
      %p53 = por %p51, %p52
      %p55 = scmp.ne.s32.totalorder %s40, %s54
      %p56 = scmp.eq.s32.totalorder %s23, 0
      %p57 = por %p55, %p56
      %s59 = sadd.s32 %s58, 1
      %p62 = scmp.eq.s32.totalorder %s17, 7
      %p63 = scmp.ne.s32.totalorder %s58, %s60
      %p64 = scmp.eq.s32.totalorder %s17, 0
      %p65 = por %p63, %p64
      %p66 = scmp.ne.s32.totalorder %s58, %s60
      %p67 = scmp.eq.s32.totalorder %s22, 7
      %p68 = por %p66, %p67
      %p69 = scmp.ne.s32.totalorder %s60, %s61
      %p70 = scmp.eq.s32.totalorder %s22, 0
      %p71 = por %p69, %p70
      %p72 = scmp.ne.s32.totalorder %s60, %s61
      %p73 = scmp.eq.s32.totalorder %s23, 7
      %p74 = por %p72, %p73
      %p76 = scmp.ne.s32.totalorder %s61, %s75
      %p77 = scmp.eq.s32.totalorder %s23, 0
      %p78 = por %p76, %p77
      %s79 = ssub.s32 %s24, %s36
      %s80 = ssub.s32 %s25, %s32
      %s81 = sor.u32 %s79, %s80
      %p82 = scmp.eq.s32.totalorder %s81, 0
      %s84 = sadd.s32 %s83, 1
      %s85 = scalar_select %p82, %s83, %s84
      %p88 = pneg %p82
      %p89 = scmp.eq.s32.totalorder %s17, 7
      %p90 = por %p88, %p89
      %p91 = scmp.ne.s32.totalorder %s83, %s86
      %p92 = scmp.eq.s32.totalorder %s17, 0
      %p93 = por %p91, %p92
      %p94 = scmp.ne.s32.totalorder %s83, %s86
      %p95 = scmp.eq.s32.totalorder %s22, 7
      %p96 = por %p94, %p95
      %p97 = scmp.ne.s32.totalorder %s86, %s87
      %p98 = scmp.eq.s32.totalorder %s22, 0
      %p99 = por %p97, %p98
      %p100 = scmp.ne.s32.totalorder %s86, %s87
      %p101 = scmp.eq.s32.totalorder %s23, 7
      %p102 = por %p100, %p101
      %p104 = scmp.ne.s32.totalorder %s87, %s103
      %p105 = scmp.eq.s32.totalorder %s23, 0
      %p106 = por %p104, %p105
      %s107 = ssub.s32 %s24, %s36
      %s108 = ssub.s32 %s25, %s32
      %s109 = sor.u32 %s107, %s108
      %p110 = scmp.eq.s32.totalorder %s109, 0
      %s112 = sadd.s32 %s111, 1
      %s113 = scalar_select %p110, %s111, %s112
      %p116 = pneg %p110
      %p117 = scmp.eq.s32.totalorder %s17, 7
      %p118 = por %p116, %p117
      %p119 = scmp.ne.s32.totalorder %s111, %s114
      %p120 = scmp.eq.s32.totalorder %s17, 0
      %p121 = por %p119, %p120
      %p122 = scmp.ne.s32.totalorder %s111, %s114
      %p123 = scmp.eq.s32.totalorder %s22, 7
      %p124 = por %p122, %p123
      %p125 = scmp.ne.s32.totalorder %s114, %s115
      %p126 = scmp.eq.s32.totalorder %s22, 0
      %p127 = por %p125, %p126
      %p128 = scmp.ne.s32.totalorder %s114, %s115
      %p129 = scmp.eq.s32.totalorder %s23, 7
      %p130 = por %p128, %p129
      %p132 = scmp.ne.s32.totalorder %s115, %s131
      %p133 = scmp.eq.s32.totalorder %s23, 0
      %p134 = por %p132, %p133
      %p135 = scmp.le.s32.totalorder 1, %s17
      %p136 = scmp.lt.s32.totalorder %s17, 9
      %p137 = pnand %p135, %p136
      %p138 = pneg %p137
      // Predicated region
      $region9: #{tpu_custom_call.1} parent=5 // pred_check
        _
      $region10: #{tpu_custom_call.1} parent=5 // pred_check_branch
        %140 = sbr.rel (%p137) target = $region12
      $region11: #{tpu_custom_call.1} parent=5 // pred_region
        %s141 = ssub.s32 %s17, 1
        // Predicated region
        $region13: #{tpu_custom_call.1} parent=11 // pred_check
          %p142 = pneg %p50
        $region14: #{tpu_custom_call.1} parent=11 // pred_check_branch
          %144 = sbr.rel (%p142) target = $region16
        $region15: #{tpu_custom_call.1} parent=11 // pred_region
          %s146 = ssub.s32 64, 64
          %147 = vsyncadd [#allocation6], %s146
          %150 = dma.hbm_to_smem %s0, 64, [#allocation3], [#allocation6]
        $region16: #{tpu_custom_call.1} parent=11 // pred_fallthru
          _
        // Predicated region
        $region17: #{tpu_custom_call.1} parent=11 // pred_check
          %p151 = pneg %p71
        $region18: #{tpu_custom_call.1} parent=11 // pred_check_branch
          %153 = sbr.rel (%p151) target = $region20
        $region19: #{tpu_custom_call.1} parent=11 // pred_region
          %s155 = ssub.s32 16, 16
          %156 = vsyncadd [#allocation7], %s155
          %s158 = sshll.u32 %s1, 4
          %s159 = int_to_ptr.vmem [resolvable:$true] %s158
          %161 = dma.vmem_to_smem %s159, 16, [#allocation8], [#allocation7]
        $region20: #{tpu_custom_call.1} parent=11 // pred_fallthru
          _
      $region12: #{tpu_custom_call.1} parent=5 // pred_fallthru
        _
      %p162 = scmp.lt.s32.totalorder %s17, 8
      // Predicated region
      $region21: #{tpu_custom_call.1} parent=5 // pred_check
        %p163 = pneg %p162
      $region22: #{tpu_custom_call.1} parent=5 // pred_check_branch
        %165 = sbr.rel (%p163) target = $region24
      $region23: #{tpu_custom_call.1} parent=5 // pred_region
        // Predicated region
        $region25: #{tpu_custom_call.1} parent=23 // pred_check
          %p166 = pneg %p93
        $region26: #{tpu_custom_call.1} parent=23 // pred_check_branch
          %168 = sbr.rel (%p166) target = $region28
        $region27: #{tpu_custom_call.1} parent=23 // pred_region
          %s169 = sand.u32 %s83, 1
          %s170 = scalar_lea.sflag [#allocation4], %s169
          %s171 = sand.u32 %s83, 1
          %s172 = smul.addr %s171, 16
          %s173 = scalar_lea.vmem [#allocation9], %s172
          %s175 = ssub.s32 256, 256
          %176 = vsyncadd %s170, %s175
          %s177 = smul.addr %s25, 2
          %s178 = smul.addr %s24, 8
          %s179 = sadd.s32 %s177, %s178
          %s180 = smul.addr %s179, 128
          %s181 = scalar_lea.hbm %s2, %s180
          %s182 = sshll.u32 %s173, 4
          %s183 = int_to_ptr.vmem [resolvable:$true] %s182
          %188 = dma.hbm_to_vmem [thread:$0]  %s181, 256, %s183, %s170, 128, 128, 8
        $region28: #{tpu_custom_call.1} parent=23 // pred_fallthru
          _
      $region24: #{tpu_custom_call.1} parent=5 // pred_fallthru
        _
      %p189 = scmp.le.s32.totalorder 1, %s17
      %p190 = scmp.lt.s32.totalorder %s17, 9
      %p191 = pnand %p189, %p190
      %p192 = pneg %p191
      // Predicated region
      $region29: #{tpu_custom_call.1} parent=5 // pred_check
        _
      $region30: #{tpu_custom_call.1} parent=5 // pred_check_branch
        %194 = sbr.rel (%p191) target = $region32
      $region31: #{tpu_custom_call.1} parent=5 // pred_region
        %s195 = ssub.s32 %s17, 1
        // Predicated region
        $region33: #{tpu_custom_call.1} parent=31 // pred_check
          %p196 = pneg %p50
        $region34: #{tpu_custom_call.1} parent=31 // pred_check_branch
          %198 = sbr.rel (%p196) target = $region36
        $region35: #{tpu_custom_call.1} parent=31 // pred_region
          %199 = dma.done [#allocation6], 64
        $region36: #{tpu_custom_call.1} parent=31 // pred_fallthru
          _
        // Predicated region
        $region37: #{tpu_custom_call.1} parent=31 // pred_check
          %p200 = pneg %p71
        $region38: #{tpu_custom_call.1} parent=31 // pred_check_branch
          %202 = sbr.rel (%p200) target = $region40
        $region39: #{tpu_custom_call.1} parent=31 // pred_region
          %203 = dma.done [#allocation7], 16
        $region40: #{tpu_custom_call.1} parent=31 // pred_fallthru
          _
        %s204 = sand.u32 %s86, 1
        %s205 = scalar_lea.sflag [#allocation4], %s204
        %s206 = sand.u32 %s86, 1
        %s207 = smul.addr %s206, 16
        %s208 = scalar_lea.vmem [#allocation9], %s207
        // Predicated region
        $region41: #{tpu_custom_call.1} parent=31 // pred_check
          %p209 = pneg %p99
        $region42: #{tpu_custom_call.1} parent=31 // pred_check_branch
          %211 = sbr.rel (%p209) target = $region44
        $region43: #{tpu_custom_call.1} parent=31 // pred_region
          %212 = dma.done %s205, 256
        $region44: #{tpu_custom_call.1} parent=31 // pred_fallthru
          _
        %213 = sfence
        %p214 = pneg %p50
        %p215 = pneg %p47
        %p216 = pneg %p71
        %p217 = pneg %p68
        %s218 = sand.u32 %s86, 1
        %s219 = scalar_lea.sflag [#allocation4], %s218
        %s220 = sand.u32 %s86, 1
        %s221 = smul.addr %s220, 16
        %s222 = scalar_lea.vmem [#allocation9], %s221
        %p223 = pneg %p99
        %p224 = pneg %p96
        %p225 = pneg %p127
        %p226 = pneg %p124
        %s227 = sand.u32 %s114, 1
        %s228 = scalar_lea.sflag [#allocation5], %s227
        %s229 = sand.u32 %s114, 1
        %s230 = smul.addr %s229, 16
        %s231 = scalar_lea.vmem [#allocation10], %s230
        %vm232 = vcmask 179200
        %233 = vst.msk [vmem:[#allocation2] sm:$0xff] %vm232, 0.0
        %234 = vst.msk [vmem:[#allocation2 + $0x8] sm:$0xff] %vm232, 0.0
        %vm235 = vcmask 177152
        %236 = vst.msk [vmem:[#allocation2 + $0x10] sm:$0x3f] %vm235, 0.0
        %v237 = vld [vmem:[%s208] sm:$0xff]
        %v238 = vld [vmem:[%s208 + $0x8] sm:$0xff]
        %241 = vrot.lane.b32.xlu0 %v237, 3
        %v242 = vpop.permute.xlu0 %241
        %243 = vrot.lane.b32.xlu0 %v238, 3
        %v244 = vpop.permute.xlu0 %243
        %vm247 = vcmask 154648
        %248 = vst.msk [vmem:[#allocation2 + $0x3] sm:$0xff] %vm247, %v242
        %249 = vst.msk [vmem:[#allocation2 + $0xb] sm:$0xff] %vm247, %v244
        %v250 = vld [vmem:[#allocation2] sm:$0xff]
        %v251 = vld [vmem:[#allocation2 + $0x8] sm:$0xff]
        %v252 = vld [vmem:[#allocation2 + $0x10] sm:$0x3f]
        %s253 = smul.u32 %s27, 128
        %s254 = sld [smem:[#allocation3 + %s253]]
        %v255 = vstv %s254
        %v256 = vmul.f32 %v250, %v255
        %v257 = vmul.f32 %v251, %v255
        %v258 = vadd.f32 %v256, 0.0
        %v259 = vadd.f32 %v257, 0.0
        %s260 = sadd.s32 %s253, 1
        %s261 = sld [smem:[#allocation3 + %s260]]
        %v262 = vstv %s261
        %v263 = vmul.f32 %v250, %v262
        %v264 = vmul.f32 %v251, %v262
        %267 = vrot.lane.b32.xlu0 %v263, 127
        %v268 = vpop.permute.xlu0 %267
        %269 = vrot.lane.b32.xlu0 %v264, 127
        %v270 = vpop.permute.xlu0 %269
        %v273 = vadd.f32 %v258, %v268
        %v274 = vadd.f32 %v259, %v270
        %s275 = sadd.s32 %s253, 2
        %s276 = sld [smem:[#allocation3 + %s275]]
        %v277 = vstv %s276
        %v278 = vmul.f32 %v250, %v277
        %v279 = vmul.f32 %v251, %v277
        %282 = vrot.lane.b32.xlu0 %v278, 126
        %v283 = vpop.permute.xlu0 %282
        %284 = vrot.lane.b32.xlu0 %v279, 126
        %v285 = vpop.permute.xlu0 %284
        %v288 = vadd.f32 %v273, %v283
        %v289 = vadd.f32 %v274, %v285
        %s290 = sadd.s32 %s253, 3
        %s291 = sld [smem:[#allocation3 + %s290]]
        %v292 = vstv %s291
        %v293 = vmul.f32 %v250, %v292
        %v294 = vmul.f32 %v251, %v292
        %297 = vrot.lane.b32.xlu0 %v293, 125
        %v298 = vpop.permute.xlu0 %297
        %299 = vrot.lane.b32.xlu0 %v294, 125
        %v300 = vpop.permute.xlu0 %299
        %v303 = vadd.f32 %v288, %v298
        %v304 = vadd.f32 %v289, %v300
        %s305 = sadd.s32 %s253, 4
        %s306 = sld [smem:[#allocation3 + %s305]]
        %v307 = vstv %s306
        %v308 = vmul.f32 %v250, %v307
        %v309 = vmul.f32 %v251, %v307
        %312 = vrot.lane.b32.xlu0 %v308, 124
        %v313 = vpop.permute.xlu0 %312
        %314 = vrot.lane.b32.xlu0 %v309, 124
        %v315 = vpop.permute.xlu0 %314
        %v318 = vadd.f32 %v303, %v313
        %v319 = vadd.f32 %v304, %v315
        %s320 = sadd.s32 %s253, 5
        %s321 = sld [smem:[#allocation3 + %s320]]
        %v322 = vstv %s321
        %v323 = vmul.f32 %v250, %v322
        %v324 = vmul.f32 %v251, %v322
        %327 = vrot.lane.b32.xlu0 %v323, 123
        %v328 = vpop.permute.xlu0 %327
        %329 = vrot.lane.b32.xlu0 %v324, 123
        %v330 = vpop.permute.xlu0 %329
        %v333 = vadd.f32 %v318, %v328
        %v334 = vadd.f32 %v319, %v330
        %s335 = sadd.s32 %s253, 6
        %s336 = sld [smem:[#allocation3 + %s335]]
        %v337 = vstv %s336
        %v338 = vmul.f32 %v250, %v337
        %v339 = vmul.f32 %v251, %v337
        %342 = vrot.lane.b32.xlu0 %v338, 122
        %v343 = vpop.permute.xlu0 %342
        %344 = vrot.lane.b32.xlu0 %v339, 122
        %v345 = vpop.permute.xlu0 %344
        %v348 = vadd.f32 %v333, %v343
        %v349 = vadd.f32 %v334, %v345
        %s350 = sadd.s32 %s253, 7
        %s351 = sld [smem:[#allocation3 + %s350]]
        %v352 = vstv %s351
        %v353 = vmul.f32 %v250, %v352
        %v354 = vmul.f32 %v251, %v352
        %v355 = vmul.f32 %v252, %v352
        %vm359 = vcmask 1046528
        %v360 = vrot.slane %v353, 1
        %v361 = vrot.slane %v354, 1
        %v362 = vsel %vm359, %v360, %v361
        %v363 = vrot.slane %v355, 1
        %v364 = vsel %vm359, %v361, %v363
        %v367 = vadd.f32 %v348, %v362
        %v368 = vadd.f32 %v349, %v364
        %s369 = sadd.s32 %s253, 8
        %s370 = sld [smem:[#allocation3 + %s369]]
        %v371 = vstv %s370
        %v372 = vmul.f32 %v250, %v371
        %v373 = vmul.f32 %v251, %v371
        %v374 = vmul.f32 %v252, %v371
        %v378 = vrot.slane %v372, 1
        %v379 = vrot.slane %v373, 1
        %v380 = vsel %vm359, %v378, %v379
        %v381 = vrot.slane %v374, 1
        %v382 = vsel %vm359, %v379, %v381
        %383 = vrot.lane.b32.xlu0 %v380, 127
        %v384 = vpop.permute.xlu0 %383
        %385 = vrot.lane.b32.xlu0 %v382, 127
        %v386 = vpop.permute.xlu0 %385
        %v389 = vadd.f32 %v367, %v384
        %v390 = vadd.f32 %v368, %v386
        %s391 = sadd.s32 %s253, 9
        %s392 = sld [smem:[#allocation3 + %s391]]
        %v393 = vstv %s392
        %v394 = vmul.f32 %v250, %v393
        %v395 = vmul.f32 %v251, %v393
        %v396 = vmul.f32 %v252, %v393
        %v400 = vrot.slane %v394, 1
        %v401 = vrot.slane %v395, 1
        %v402 = vsel %vm359, %v400, %v401
        %v403 = vrot.slane %v396, 1
        %v404 = vsel %vm359, %v401, %v403
        %405 = vrot.lane.b32.xlu0 %v402, 126
        %v406 = vpop.permute.xlu0 %405
        %407 = vrot.lane.b32.xlu0 %v404, 126
        %v408 = vpop.permute.xlu0 %407
        %v411 = vadd.f32 %v389, %v406
        %v412 = vadd.f32 %v390, %v408
        %s413 = sadd.s32 %s253, 10
        %s414 = sld [smem:[#allocation3 + %s413]]
        %v415 = vstv %s414
        %v416 = vmul.f32 %v250, %v415
        %v417 = vmul.f32 %v251, %v415
        %v418 = vmul.f32 %v252, %v415
        %v422 = vrot.slane %v416, 1
        %v423 = vrot.slane %v417, 1
        %v424 = vsel %vm359, %v422, %v423
        %v425 = vrot.slane %v418, 1
        %v426 = vsel %vm359, %v423, %v425
        %427 = vrot.lane.b32.xlu0 %v424, 125
        %v428 = vpop.permute.xlu0 %427
        %429 = vrot.lane.b32.xlu0 %v426, 125
        %v430 = vpop.permute.xlu0 %429
        %v433 = vadd.f32 %v411, %v428
        %v434 = vadd.f32 %v412, %v430
        %s435 = sadd.s32 %s253, 11
        %s436 = sld [smem:[#allocation3 + %s435]]
        %v437 = vstv %s436
        %v438 = vmul.f32 %v250, %v437
        %v439 = vmul.f32 %v251, %v437
        %v440 = vmul.f32 %v252, %v437
        %v444 = vrot.slane %v438, 1
        %v445 = vrot.slane %v439, 1
        %v446 = vsel %vm359, %v444, %v445
        %v447 = vrot.slane %v440, 1
        %v448 = vsel %vm359, %v445, %v447
        %449 = vrot.lane.b32.xlu0 %v446, 124
        %v450 = vpop.permute.xlu0 %449
        %451 = vrot.lane.b32.xlu0 %v448, 124
        %v452 = vpop.permute.xlu0 %451
        %v455 = vadd.f32 %v433, %v450
        %v456 = vadd.f32 %v434, %v452
        %s457 = sadd.s32 %s253, 12
        %s458 = sld [smem:[#allocation3 + %s457]]
        %v459 = vstv %s458
        %v460 = vmul.f32 %v250, %v459
        %v461 = vmul.f32 %v251, %v459
        %v462 = vmul.f32 %v252, %v459
        %v466 = vrot.slane %v460, 1
        %v467 = vrot.slane %v461, 1
        %v468 = vsel %vm359, %v466, %v467
        %v469 = vrot.slane %v462, 1
        %v470 = vsel %vm359, %v467, %v469
        %471 = vrot.lane.b32.xlu0 %v468, 123
        %v472 = vpop.permute.xlu0 %471
        %473 = vrot.lane.b32.xlu0 %v470, 123
        %v474 = vpop.permute.xlu0 %473
        %v477 = vadd.f32 %v455, %v472
        %v478 = vadd.f32 %v456, %v474
        %s479 = sadd.s32 %s253, 13
        %s480 = sld [smem:[#allocation3 + %s479]]
        %v481 = vstv %s480
        %v482 = vmul.f32 %v250, %v481
        %v483 = vmul.f32 %v251, %v481
        %v484 = vmul.f32 %v252, %v481
        %v488 = vrot.slane %v482, 1
        %v489 = vrot.slane %v483, 1
        %v490 = vsel %vm359, %v488, %v489
        %v491 = vrot.slane %v484, 1
        %v492 = vsel %vm359, %v489, %v491
        %493 = vrot.lane.b32.xlu0 %v490, 122
        %v494 = vpop.permute.xlu0 %493
        %495 = vrot.lane.b32.xlu0 %v492, 122
        %v496 = vpop.permute.xlu0 %495
        %v499 = vadd.f32 %v477, %v494
        %v500 = vadd.f32 %v478, %v496
        %s501 = sadd.s32 %s253, 14
        %s502 = sld [smem:[#allocation3 + %s501]]
        %v503 = vstv %s502
        %v504 = vmul.f32 %v250, %v503
        %v505 = vmul.f32 %v251, %v503
        %v506 = vmul.f32 %v252, %v503
        %vm510 = vcmask 1045504
        %v511 = vrot.slane %v504, 2
        %v512 = vrot.slane %v505, 2
        %v513 = vsel %vm510, %v511, %v512
        %v514 = vrot.slane %v506, 2
        %v515 = vsel %vm510, %v512, %v514
        %v518 = vadd.f32 %v499, %v513
        %v519 = vadd.f32 %v500, %v515
        %s520 = sadd.s32 %s253, 15
        %s521 = sld [smem:[#allocation3 + %s520]]
        %v522 = vstv %s521
        %v523 = vmul.f32 %v250, %v522
        %v524 = vmul.f32 %v251, %v522
        %v525 = vmul.f32 %v252, %v522
        %v529 = vrot.slane %v523, 2
        %v530 = vrot.slane %v524, 2
        %v531 = vsel %vm510, %v529, %v530
        %v532 = vrot.slane %v525, 2
        %v533 = vsel %vm510, %v530, %v532
        %534 = vrot.lane.b32.xlu0 %v531, 127
        %v535 = vpop.permute.xlu0 %534
        %536 = vrot.lane.b32.xlu0 %v533, 127
        %v537 = vpop.permute.xlu0 %536
        %v540 = vadd.f32 %v518, %v535
        %v541 = vadd.f32 %v519, %v537
        %s542 = sadd.s32 %s253, 16
        %s543 = sld [smem:[#allocation3 + %s542]]
        %v544 = vstv %s543
        %v545 = vmul.f32 %v250, %v544
        %v546 = vmul.f32 %v251, %v544
        %v547 = vmul.f32 %v252, %v544
        %v551 = vrot.slane %v545, 2
        %v552 = vrot.slane %v546, 2
        %v553 = vsel %vm510, %v551, %v552
        %v554 = vrot.slane %v547, 2
        %v555 = vsel %vm510, %v552, %v554
        %556 = vrot.lane.b32.xlu0 %v553, 126
        %v557 = vpop.permute.xlu0 %556
        %558 = vrot.lane.b32.xlu0 %v555, 126
        %v559 = vpop.permute.xlu0 %558
        %v562 = vadd.f32 %v540, %v557
        %v563 = vadd.f32 %v541, %v559
        %s564 = sadd.s32 %s253, 17
        %s565 = sld [smem:[#allocation3 + %s564]]
        %v566 = vstv %s565
        %v567 = vmul.f32 %v250, %v566
        %v568 = vmul.f32 %v251, %v566
        %v569 = vmul.f32 %v252, %v566
        %v573 = vrot.slane %v567, 2
        %v574 = vrot.slane %v568, 2
        %v575 = vsel %vm510, %v573, %v574
        %v576 = vrot.slane %v569, 2
        %v577 = vsel %vm510, %v574, %v576
        %578 = vrot.lane.b32.xlu0 %v575, 125
        %v579 = vpop.permute.xlu0 %578
        %580 = vrot.lane.b32.xlu0 %v577, 125
        %v581 = vpop.permute.xlu0 %580
        %v584 = vadd.f32 %v562, %v579
        %v585 = vadd.f32 %v563, %v581
        %s586 = sadd.s32 %s253, 18
        %s587 = sld [smem:[#allocation3 + %s586]]
        %v588 = vstv %s587
        %v589 = vmul.f32 %v250, %v588
        %v590 = vmul.f32 %v251, %v588
        %v591 = vmul.f32 %v252, %v588
        %v595 = vrot.slane %v589, 2
        %v596 = vrot.slane %v590, 2
        %v597 = vsel %vm510, %v595, %v596
        %v598 = vrot.slane %v591, 2
        %v599 = vsel %vm510, %v596, %v598
        %600 = vrot.lane.b32.xlu0 %v597, 124
        %v601 = vpop.permute.xlu0 %600
        %602 = vrot.lane.b32.xlu0 %v599, 124
        %v603 = vpop.permute.xlu0 %602
        %v606 = vadd.f32 %v584, %v601
        %v607 = vadd.f32 %v585, %v603
        %s608 = sadd.s32 %s253, 19
        %s609 = sld [smem:[#allocation3 + %s608]]
        %v610 = vstv %s609
        %v611 = vmul.f32 %v250, %v610
        %v612 = vmul.f32 %v251, %v610
        %v613 = vmul.f32 %v252, %v610
        %v617 = vrot.slane %v611, 2
        %v618 = vrot.slane %v612, 2
        %v619 = vsel %vm510, %v617, %v618
        %v620 = vrot.slane %v613, 2
        %v621 = vsel %vm510, %v618, %v620
        %622 = vrot.lane.b32.xlu0 %v619, 123
        %v623 = vpop.permute.xlu0 %622
        %624 = vrot.lane.b32.xlu0 %v621, 123
        %v625 = vpop.permute.xlu0 %624
        %v628 = vadd.f32 %v606, %v623
        %v629 = vadd.f32 %v607, %v625
        %s630 = sadd.s32 %s253, 20
        %s631 = sld [smem:[#allocation3 + %s630]]
        %v632 = vstv %s631
        %v633 = vmul.f32 %v250, %v632
        %v634 = vmul.f32 %v251, %v632
        %v635 = vmul.f32 %v252, %v632
        %v639 = vrot.slane %v633, 2
        %v640 = vrot.slane %v634, 2
        %v641 = vsel %vm510, %v639, %v640
        %v642 = vrot.slane %v635, 2
        %v643 = vsel %vm510, %v640, %v642
        %644 = vrot.lane.b32.xlu0 %v641, 122
        %v645 = vpop.permute.xlu0 %644
        %646 = vrot.lane.b32.xlu0 %v643, 122
        %v647 = vpop.permute.xlu0 %646
        %v650 = vadd.f32 %v628, %v645
        %v651 = vadd.f32 %v629, %v647
        %s652 = sadd.s32 %s253, 21
        %s653 = sld [smem:[#allocation3 + %s652]]
        %v654 = vstv %s653
        %v655 = vmul.f32 %v250, %v654
        %v656 = vmul.f32 %v251, %v654
        %v657 = vmul.f32 %v252, %v654
        %vm661 = vcmask 1044480
        %v662 = vrot.slane %v655, 3
        %v663 = vrot.slane %v656, 3
        %v664 = vsel %vm661, %v662, %v663
        %v665 = vrot.slane %v657, 3
        %v666 = vsel %vm661, %v663, %v665
        %v669 = vadd.f32 %v650, %v664
        %v670 = vadd.f32 %v651, %v666
        %s671 = sadd.s32 %s253, 22
        %s672 = sld [smem:[#allocation3 + %s671]]
        %v673 = vstv %s672
        %v674 = vmul.f32 %v250, %v673
        %v675 = vmul.f32 %v251, %v673
        %v676 = vmul.f32 %v252, %v673
        %v680 = vrot.slane %v674, 3
        %v681 = vrot.slane %v675, 3
        %v682 = vsel %vm661, %v680, %v681
        %v683 = vrot.slane %v676, 3
        %v684 = vsel %vm661, %v681, %v683
        %685 = vrot.lane.b32.xlu0 %v682, 127
        %v686 = vpop.permute.xlu0 %685
        %687 = vrot.lane.b32.xlu0 %v684, 127
        %v688 = vpop.permute.xlu0 %687
        %v691 = vadd.f32 %v669, %v686
        %v692 = vadd.f32 %v670, %v688
        %s693 = sadd.s32 %s253, 23
        %s694 = sld [smem:[#allocation3 + %s693]]
        %v695 = vstv %s694
        %v696 = vmul.f32 %v250, %v695
        %v697 = vmul.f32 %v251, %v695
        %v698 = vmul.f32 %v252, %v695
        %v702 = vrot.slane %v696, 3
        %v703 = vrot.slane %v697, 3
        %v704 = vsel %vm661, %v702, %v703
        %v705 = vrot.slane %v698, 3
        %v706 = vsel %vm661, %v703, %v705
        %707 = vrot.lane.b32.xlu0 %v704, 126
        %v708 = vpop.permute.xlu0 %707
        %709 = vrot.lane.b32.xlu0 %v706, 126
        %v710 = vpop.permute.xlu0 %709
        %v713 = vadd.f32 %v691, %v708
        %v714 = vadd.f32 %v692, %v710
        %s715 = sadd.s32 %s253, 24
        %s716 = sld [smem:[#allocation3 + %s715]]
        %v717 = vstv %s716
        %v718 = vmul.f32 %v250, %v717
        %v719 = vmul.f32 %v251, %v717
        %v720 = vmul.f32 %v252, %v717
        %v724 = vrot.slane %v718, 3
        %v725 = vrot.slane %v719, 3
        %v726 = vsel %vm661, %v724, %v725
        %v727 = vrot.slane %v720, 3
        %v728 = vsel %vm661, %v725, %v727
        %729 = vrot.lane.b32.xlu0 %v726, 125
        %v730 = vpop.permute.xlu0 %729
        %731 = vrot.lane.b32.xlu0 %v728, 125
        %v732 = vpop.permute.xlu0 %731
        %v735 = vadd.f32 %v713, %v730
        %v736 = vadd.f32 %v714, %v732
        %s737 = sadd.s32 %s253, 25
        %s738 = sld [smem:[#allocation3 + %s737]]
        %v739 = vstv %s738
        %v740 = vmul.f32 %v250, %v739
        %v741 = vmul.f32 %v251, %v739
        %v742 = vmul.f32 %v252, %v739
        %v746 = vrot.slane %v740, 3
        %v747 = vrot.slane %v741, 3
        %v748 = vsel %vm661, %v746, %v747
        %v749 = vrot.slane %v742, 3
        %v750 = vsel %vm661, %v747, %v749
        %751 = vrot.lane.b32.xlu0 %v748, 124
        %v752 = vpop.permute.xlu0 %751
        %753 = vrot.lane.b32.xlu0 %v750, 124
        %v754 = vpop.permute.xlu0 %753
        %v757 = vadd.f32 %v735, %v752
        %v758 = vadd.f32 %v736, %v754
        %s759 = sadd.s32 %s253, 26
        %s760 = sld [smem:[#allocation3 + %s759]]
        %v761 = vstv %s760
        %v762 = vmul.f32 %v250, %v761
        %v763 = vmul.f32 %v251, %v761
        %v764 = vmul.f32 %v252, %v761
        %v768 = vrot.slane %v762, 3
        %v769 = vrot.slane %v763, 3
        %v770 = vsel %vm661, %v768, %v769
        %v771 = vrot.slane %v764, 3
        %v772 = vsel %vm661, %v769, %v771
        %773 = vrot.lane.b32.xlu0 %v770, 123
        %v774 = vpop.permute.xlu0 %773
        %775 = vrot.lane.b32.xlu0 %v772, 123
        %v776 = vpop.permute.xlu0 %775
        %v779 = vadd.f32 %v757, %v774
        %v780 = vadd.f32 %v758, %v776
        %s781 = sadd.s32 %s253, 27
        %s782 = sld [smem:[#allocation3 + %s781]]
        %v783 = vstv %s782
        %v784 = vmul.f32 %v250, %v783
        %v785 = vmul.f32 %v251, %v783
        %v786 = vmul.f32 %v252, %v783
        %v790 = vrot.slane %v784, 3
        %v791 = vrot.slane %v785, 3
        %v792 = vsel %vm661, %v790, %v791
        %v793 = vrot.slane %v786, 3
        %v794 = vsel %vm661, %v791, %v793
        %795 = vrot.lane.b32.xlu0 %v792, 122
        %v796 = vpop.permute.xlu0 %795
        %797 = vrot.lane.b32.xlu0 %v794, 122
        %v798 = vpop.permute.xlu0 %797
        %v801 = vadd.f32 %v779, %v796
        %v802 = vadd.f32 %v780, %v798
        %s803 = sadd.s32 %s253, 28
        %s804 = sld [smem:[#allocation3 + %s803]]
        %v805 = vstv %s804
        %v806 = vmul.f32 %v250, %v805
        %v807 = vmul.f32 %v251, %v805
        %v808 = vmul.f32 %v252, %v805
        %vm812 = vcmask 1043456
        %v813 = vrot.slane %v806, 4
        %v814 = vrot.slane %v807, 4
        %v815 = vsel %vm812, %v813, %v814
        %v816 = vrot.slane %v808, 4
        %v817 = vsel %vm812, %v814, %v816
        %v820 = vadd.f32 %v801, %v815
        %v821 = vadd.f32 %v802, %v817
        %s822 = sadd.s32 %s253, 29
        %s823 = sld [smem:[#allocation3 + %s822]]
        %v824 = vstv %s823
        %v825 = vmul.f32 %v250, %v824
        %v826 = vmul.f32 %v251, %v824
        %v827 = vmul.f32 %v252, %v824
        %v831 = vrot.slane %v825, 4
        %v832 = vrot.slane %v826, 4
        %v833 = vsel %vm812, %v831, %v832
        %v834 = vrot.slane %v827, 4
        %v835 = vsel %vm812, %v832, %v834
        %836 = vrot.lane.b32.xlu0 %v833, 127
        %v837 = vpop.permute.xlu0 %836
        %838 = vrot.lane.b32.xlu0 %v835, 127
        %v839 = vpop.permute.xlu0 %838
        %v842 = vadd.f32 %v820, %v837
        %v843 = vadd.f32 %v821, %v839
        %s844 = sadd.s32 %s253, 30
        %s845 = sld [smem:[#allocation3 + %s844]]
        %v846 = vstv %s845
        %v847 = vmul.f32 %v250, %v846
        %v848 = vmul.f32 %v251, %v846
        %v849 = vmul.f32 %v252, %v846
        %v853 = vrot.slane %v847, 4
        %v854 = vrot.slane %v848, 4
        %v855 = vsel %vm812, %v853, %v854
        %v856 = vrot.slane %v849, 4
        %v857 = vsel %vm812, %v854, %v856
        %858 = vrot.lane.b32.xlu0 %v855, 126
        %v859 = vpop.permute.xlu0 %858
        %860 = vrot.lane.b32.xlu0 %v857, 126
        %v861 = vpop.permute.xlu0 %860
        %v864 = vadd.f32 %v842, %v859
        %v865 = vadd.f32 %v843, %v861
        %s866 = sadd.s32 %s253, 31
        %s867 = sld [smem:[#allocation3 + %s866]]
        %v868 = vstv %s867
        %v869 = vmul.f32 %v250, %v868
        %v870 = vmul.f32 %v251, %v868
        %v871 = vmul.f32 %v252, %v868
        %v875 = vrot.slane %v869, 4
        %v876 = vrot.slane %v870, 4
        %v877 = vsel %vm812, %v875, %v876
        %v878 = vrot.slane %v871, 4
        %v879 = vsel %vm812, %v876, %v878
        %880 = vrot.lane.b32.xlu0 %v877, 125
        %v881 = vpop.permute.xlu0 %880
        %882 = vrot.lane.b32.xlu0 %v879, 125
        %v883 = vpop.permute.xlu0 %882
        %v886 = vadd.f32 %v864, %v881
        %v887 = vadd.f32 %v865, %v883
        %s888 = sadd.s32 %s253, 32
        %s889 = sld [smem:[#allocation3 + %s888]]
        %v890 = vstv %s889
        %v891 = vmul.f32 %v250, %v890
        %v892 = vmul.f32 %v251, %v890
        %v893 = vmul.f32 %v252, %v890
        %v897 = vrot.slane %v891, 4
        %v898 = vrot.slane %v892, 4
        %v899 = vsel %vm812, %v897, %v898
        %v900 = vrot.slane %v893, 4
        %v901 = vsel %vm812, %v898, %v900
        %902 = vrot.lane.b32.xlu0 %v899, 124
        %v903 = vpop.permute.xlu0 %902
        %904 = vrot.lane.b32.xlu0 %v901, 124
        %v905 = vpop.permute.xlu0 %904
        %v908 = vadd.f32 %v886, %v903
        %v909 = vadd.f32 %v887, %v905
        %s910 = sadd.s32 %s253, 33
        %s911 = sld [smem:[#allocation3 + %s910]]
        %v912 = vstv %s911
        %v913 = vmul.f32 %v250, %v912
        %v914 = vmul.f32 %v251, %v912
        %v915 = vmul.f32 %v252, %v912
        %v919 = vrot.slane %v913, 4
        %v920 = vrot.slane %v914, 4
        %v921 = vsel %vm812, %v919, %v920
        %v922 = vrot.slane %v915, 4
        %v923 = vsel %vm812, %v920, %v922
        %924 = vrot.lane.b32.xlu0 %v921, 123
        %v925 = vpop.permute.xlu0 %924
        %926 = vrot.lane.b32.xlu0 %v923, 123
        %v927 = vpop.permute.xlu0 %926
        %v930 = vadd.f32 %v908, %v925
        %v931 = vadd.f32 %v909, %v927
        %s932 = sadd.s32 %s253, 34
        %s933 = sld [smem:[#allocation3 + %s932]]
        %v934 = vstv %s933
        %v935 = vmul.f32 %v250, %v934
        %v936 = vmul.f32 %v251, %v934
        %v937 = vmul.f32 %v252, %v934
        %v941 = vrot.slane %v935, 4
        %v942 = vrot.slane %v936, 4
        %v943 = vsel %vm812, %v941, %v942
        %v944 = vrot.slane %v937, 4
        %v945 = vsel %vm812, %v942, %v944
        %946 = vrot.lane.b32.xlu0 %v943, 122
        %v947 = vpop.permute.xlu0 %946
        %948 = vrot.lane.b32.xlu0 %v945, 122
        %v949 = vpop.permute.xlu0 %948
        %v952 = vadd.f32 %v930, %v947
        %v953 = vadd.f32 %v931, %v949
        %s954 = sadd.s32 %s253, 35
        %s955 = sld [smem:[#allocation3 + %s954]]
        %v956 = vstv %s955
        %v957 = vmul.f32 %v250, %v956
        %v958 = vmul.f32 %v251, %v956
        %v959 = vmul.f32 %v252, %v956
        %vm963 = vcmask 1042432
        %v964 = vrot.slane %v957, 5
        %v965 = vrot.slane %v958, 5
        %v966 = vsel %vm963, %v964, %v965
        %v967 = vrot.slane %v959, 5
        %v968 = vsel %vm963, %v965, %v967
        %v971 = vadd.f32 %v952, %v966
        %v972 = vadd.f32 %v953, %v968
        %s973 = sadd.s32 %s253, 36
        %s974 = sld [smem:[#allocation3 + %s973]]
        %v975 = vstv %s974
        %v976 = vmul.f32 %v250, %v975
        %v977 = vmul.f32 %v251, %v975
        %v978 = vmul.f32 %v252, %v975
        %v982 = vrot.slane %v976, 5
        %v983 = vrot.slane %v977, 5
        %v984 = vsel %vm963, %v982, %v983
        %v985 = vrot.slane %v978, 5
        %v986 = vsel %vm963, %v983, %v985
        %987 = vrot.lane.b32.xlu0 %v984, 127
        %v988 = vpop.permute.xlu0 %987
        %989 = vrot.lane.b32.xlu0 %v986, 127
        %v990 = vpop.permute.xlu0 %989
        %v993 = vadd.f32 %v971, %v988
        %v994 = vadd.f32 %v972, %v990
        %s995 = sadd.s32 %s253, 37
        %s996 = sld [smem:[#allocation3 + %s995]]
        %v997 = vstv %s996
        %v998 = vmul.f32 %v250, %v997
        %v999 = vmul.f32 %v251, %v997
        %v1000 = vmul.f32 %v252, %v997
        %v1004 = vrot.slane %v998, 5
        %v1005 = vrot.slane %v999, 5
        %v1006 = vsel %vm963, %v1004, %v1005
        %v1007 = vrot.slane %v1000, 5
        %v1008 = vsel %vm963, %v1005, %v1007
        %1009 = vrot.lane.b32.xlu0 %v1006, 126
        %v1010 = vpop.permute.xlu0 %1009
        %1011 = vrot.lane.b32.xlu0 %v1008, 126
        %v1012 = vpop.permute.xlu0 %1011
        %v1015 = vadd.f32 %v993, %v1010
        %v1016 = vadd.f32 %v994, %v1012
        %s1017 = sadd.s32 %s253, 38
        %s1018 = sld [smem:[#allocation3 + %s1017]]
        %v1019 = vstv %s1018
        %v1020 = vmul.f32 %v250, %v1019
        %v1021 = vmul.f32 %v251, %v1019
        %v1022 = vmul.f32 %v252, %v1019
        %v1026 = vrot.slane %v1020, 5
        %v1027 = vrot.slane %v1021, 5
        %v1028 = vsel %vm963, %v1026, %v1027
        %v1029 = vrot.slane %v1022, 5
        %v1030 = vsel %vm963, %v1027, %v1029
        %1031 = vrot.lane.b32.xlu0 %v1028, 125
        %v1032 = vpop.permute.xlu0 %1031
        %1033 = vrot.lane.b32.xlu0 %v1030, 125
        %v1034 = vpop.permute.xlu0 %1033
        %v1037 = vadd.f32 %v1015, %v1032
        %v1038 = vadd.f32 %v1016, %v1034
        %s1039 = sadd.s32 %s253, 39
        %s1040 = sld [smem:[#allocation3 + %s1039]]
        %v1041 = vstv %s1040
        %v1042 = vmul.f32 %v250, %v1041
        %v1043 = vmul.f32 %v251, %v1041
        %v1044 = vmul.f32 %v252, %v1041
        %v1048 = vrot.slane %v1042, 5
        %v1049 = vrot.slane %v1043, 5
        %v1050 = vsel %vm963, %v1048, %v1049
        %v1051 = vrot.slane %v1044, 5
        %v1052 = vsel %vm963, %v1049, %v1051
        %1053 = vrot.lane.b32.xlu0 %v1050, 124
        %v1054 = vpop.permute.xlu0 %1053
        %1055 = vrot.lane.b32.xlu0 %v1052, 124
        %v1056 = vpop.permute.xlu0 %1055
        %v1059 = vadd.f32 %v1037, %v1054
        %v1060 = vadd.f32 %v1038, %v1056
        %s1061 = sadd.s32 %s253, 40
        %s1062 = sld [smem:[#allocation3 + %s1061]]
        %v1063 = vstv %s1062
        %v1064 = vmul.f32 %v250, %v1063
        %v1065 = vmul.f32 %v251, %v1063
        %v1066 = vmul.f32 %v252, %v1063
        %v1070 = vrot.slane %v1064, 5
        %v1071 = vrot.slane %v1065, 5
        %v1072 = vsel %vm963, %v1070, %v1071
        %v1073 = vrot.slane %v1066, 5
        %v1074 = vsel %vm963, %v1071, %v1073
        %1075 = vrot.lane.b32.xlu0 %v1072, 123
        %v1076 = vpop.permute.xlu0 %1075
        %1077 = vrot.lane.b32.xlu0 %v1074, 123
        %v1078 = vpop.permute.xlu0 %1077
        %v1081 = vadd.f32 %v1059, %v1076
        %v1082 = vadd.f32 %v1060, %v1078
        %s1083 = sadd.s32 %s253, 41
        %s1084 = sld [smem:[#allocation3 + %s1083]]
        %v1085 = vstv %s1084
        %v1086 = vmul.f32 %v250, %v1085
        %v1087 = vmul.f32 %v251, %v1085
        %v1088 = vmul.f32 %v252, %v1085
        %v1092 = vrot.slane %v1086, 5
        %v1093 = vrot.slane %v1087, 5
        %v1094 = vsel %vm963, %v1092, %v1093
        %v1095 = vrot.slane %v1088, 5
        %v1096 = vsel %vm963, %v1093, %v1095
        %1097 = vrot.lane.b32.xlu0 %v1094, 122
        %v1098 = vpop.permute.xlu0 %1097
        %1099 = vrot.lane.b32.xlu0 %v1096, 122
        %v1100 = vpop.permute.xlu0 %1099
        %v1103 = vadd.f32 %v1081, %v1098
        %v1104 = vadd.f32 %v1082, %v1100
        %s1105 = sadd.s32 %s253, 42
        %s1106 = sld [smem:[#allocation3 + %s1105]]
        %v1107 = vstv %s1106
        %v1108 = vmul.f32 %v250, %v1107
        %v1109 = vmul.f32 %v251, %v1107
        %v1110 = vmul.f32 %v252, %v1107
        %vm1114 = vcmask 1041408
        %v1115 = vrot.slane %v1108, 6
        %v1116 = vrot.slane %v1109, 6
        %v1117 = vsel %vm1114, %v1115, %v1116
        %v1118 = vrot.slane %v1110, 6
        %v1119 = vsel %vm1114, %v1116, %v1118
        %v1122 = vadd.f32 %v1103, %v1117
        %v1123 = vadd.f32 %v1104, %v1119
        %s1124 = sadd.s32 %s253, 43
        %s1125 = sld [smem:[#allocation3 + %s1124]]
        %v1126 = vstv %s1125
        %v1127 = vmul.f32 %v250, %v1126
        %v1128 = vmul.f32 %v251, %v1126
        %v1129 = vmul.f32 %v252, %v1126
        %v1133 = vrot.slane %v1127, 6
        %v1134 = vrot.slane %v1128, 6
        %v1135 = vsel %vm1114, %v1133, %v1134
        %v1136 = vrot.slane %v1129, 6
        %v1137 = vsel %vm1114, %v1134, %v1136
        %1138 = vrot.lane.b32.xlu0 %v1135, 127
        %v1139 = vpop.permute.xlu0 %1138
        %1140 = vrot.lane.b32.xlu0 %v1137, 127
        %v1141 = vpop.permute.xlu0 %1140
        %v1144 = vadd.f32 %v1122, %v1139
        %v1145 = vadd.f32 %v1123, %v1141
        %s1146 = sadd.s32 %s253, 44
        %s1147 = sld [smem:[#allocation3 + %s1146]]
        %v1148 = vstv %s1147
        %v1149 = vmul.f32 %v250, %v1148
        %v1150 = vmul.f32 %v251, %v1148
        %v1151 = vmul.f32 %v252, %v1148
        %v1155 = vrot.slane %v1149, 6
        %v1156 = vrot.slane %v1150, 6
        %v1157 = vsel %vm1114, %v1155, %v1156
        %v1158 = vrot.slane %v1151, 6
        %v1159 = vsel %vm1114, %v1156, %v1158
        %1160 = vrot.lane.b32.xlu0 %v1157, 126
        %v1161 = vpop.permute.xlu0 %1160
        %1162 = vrot.lane.b32.xlu0 %v1159, 126
        %v1163 = vpop.permute.xlu0 %1162
        %v1166 = vadd.f32 %v1144, %v1161
        %v1167 = vadd.f32 %v1145, %v1163
        %s1168 = sadd.s32 %s253, 45
        %s1169 = sld [smem:[#allocation3 + %s1168]]
        %v1170 = vstv %s1169
        %v1171 = vmul.f32 %v250, %v1170
        %v1172 = vmul.f32 %v251, %v1170
        %v1173 = vmul.f32 %v252, %v1170
        %v1177 = vrot.slane %v1171, 6
        %v1178 = vrot.slane %v1172, 6
        %v1179 = vsel %vm1114, %v1177, %v1178
        %v1180 = vrot.slane %v1173, 6
        %v1181 = vsel %vm1114, %v1178, %v1180
        %1182 = vrot.lane.b32.xlu0 %v1179, 125
        %v1183 = vpop.permute.xlu0 %1182
        %1184 = vrot.lane.b32.xlu0 %v1181, 125
        %v1185 = vpop.permute.xlu0 %1184
        %v1188 = vadd.f32 %v1166, %v1183
        %v1189 = vadd.f32 %v1167, %v1185
        %s1190 = sadd.s32 %s253, 46
        %s1191 = sld [smem:[#allocation3 + %s1190]]
        %v1192 = vstv %s1191
        %v1193 = vmul.f32 %v250, %v1192
        %v1194 = vmul.f32 %v251, %v1192
        %v1195 = vmul.f32 %v252, %v1192
        %v1199 = vrot.slane %v1193, 6
        %v1200 = vrot.slane %v1194, 6
        %v1201 = vsel %vm1114, %v1199, %v1200
        %v1202 = vrot.slane %v1195, 6
        %v1203 = vsel %vm1114, %v1200, %v1202
        %1204 = vrot.lane.b32.xlu0 %v1201, 124
        %v1205 = vpop.permute.xlu0 %1204
        %1206 = vrot.lane.b32.xlu0 %v1203, 124
        %v1207 = vpop.permute.xlu0 %1206
        %v1210 = vadd.f32 %v1188, %v1205
        %v1211 = vadd.f32 %v1189, %v1207
        %s1212 = sadd.s32 %s253, 47
        %s1213 = sld [smem:[#allocation3 + %s1212]]
        %v1214 = vstv %s1213
        %v1215 = vmul.f32 %v250, %v1214
        %v1216 = vmul.f32 %v251, %v1214
        %v1217 = vmul.f32 %v252, %v1214
        %v1221 = vrot.slane %v1215, 6
        %v1222 = vrot.slane %v1216, 6
        %v1223 = vsel %vm1114, %v1221, %v1222
        %v1224 = vrot.slane %v1217, 6
        %v1225 = vsel %vm1114, %v1222, %v1224
        %1226 = vrot.lane.b32.xlu0 %v1223, 123
        %v1227 = vpop.permute.xlu0 %1226
        %1228 = vrot.lane.b32.xlu0 %v1225, 123
        %v1229 = vpop.permute.xlu0 %1228
        %v1232 = vadd.f32 %v1210, %v1227
        %v1233 = vadd.f32 %v1211, %v1229
        %s1234 = sadd.s32 %s253, 48
        %s1235 = sld [smem:[#allocation3 + %s1234]]
        %v1236 = vstv %s1235
        %v1237 = vmul.f32 %v250, %v1236
        %v1238 = vmul.f32 %v251, %v1236
        %v1239 = vmul.f32 %v252, %v1236
        %v1243 = vrot.slane %v1237, 6
        %v1244 = vrot.slane %v1238, 6
        %v1245 = vsel %vm1114, %v1243, %v1244
        %v1246 = vrot.slane %v1239, 6
        %v1247 = vsel %vm1114, %v1244, %v1246
        %1248 = vrot.lane.b32.xlu0 %v1245, 122
        %v1249 = vpop.permute.xlu0 %1248
        %1250 = vrot.lane.b32.xlu0 %v1247, 122
        %v1251 = vpop.permute.xlu0 %1250
        %v1254 = vadd.f32 %v1232, %v1249
        %v1255 = vadd.f32 %v1233, %v1251
        %s1256 = sld [smem:[#allocation8 + %s27]]
        %v1257 = vstv %s1256
        %v1258 = vadd.f32 %v1254, %v1257
        %v1259 = vadd.f32 %v1255, %v1257
        %vm1260 = vcmask 130048
        %1261 = vst.msk [vmem:[%s231] sm:$0xff] %vm1260, %v1258
        %1262 = vst.msk [vmem:[%s231 + $0x8] sm:$0xff] %vm1260, %v1259
        %s1263 = sand.u32 %s114, 1
        %s1264 = scalar_lea.sflag [#allocation5], %s1263
        %s1265 = sand.u32 %s114, 1
        %s1266 = smul.addr %s1265, 16
        %s1267 = scalar_lea.vmem [#allocation10], %s1266
        // Predicated region
        $region45: #{tpu_custom_call.1} parent=31 // pred_check
          %p1268 = pneg %p124
        $region46: #{tpu_custom_call.1} parent=31 // pred_check_branch
          %1270 = sbr.rel (%p1268) target = $region48
        $region47: #{tpu_custom_call.1} parent=31 // pred_region
          %s1272 = ssub.s32 256, 256
          %1273 = vsyncadd %s1264, %s1272
          %s1274 = smul.addr %s27, 2
          %s1275 = smul.addr %s26, 8
          %s1276 = sadd.s32 %s1274, %s1275
          %s1277 = smul.addr %s1276, 128
          %s1278 = scalar_lea.hbm %s3, %s1277
          %s1279 = sshll.u32 %s1267, 4
          %s1280 = int_to_ptr.vmem [resolvable:$true] %s1279
          %1285 = dma.vmem_to_hbm [thread:$0]  %s1280, 256, %s1278, %s1264, 128, 128, 8
        $region48: #{tpu_custom_call.1} parent=31 // pred_fallthru
          _
      $region32: #{tpu_custom_call.1} parent=5 // pred_fallthru
        _
      %p1286 = scmp.le.s32.totalorder 2, %s17
      // Predicated region
      $region49: #{tpu_custom_call.1} parent=5 // pred_check
        %p1287 = pneg %p1286
      $region50: #{tpu_custom_call.1} parent=5 // pred_check_branch
        %1289 = sbr.rel (%p1287) target = $region52
      $region51: #{tpu_custom_call.1} parent=5 // pred_region
        %s1290 = ssub.s32 %s17, 2
        // Predicated region
        $region53: #{tpu_custom_call.1} parent=51 // pred_check
          %p1291 = pneg %p130
        $region54: #{tpu_custom_call.1} parent=51 // pred_check_branch
          %1293 = sbr.rel (%p1291) target = $region56
        $region55: #{tpu_custom_call.1} parent=51 // pred_region
          %s1294 = sand.u32 %s115, 1
          %s1295 = scalar_lea.sflag [#allocation5], %s1294
          %s1296 = sand.u32 %s115, 1
          %s1297 = smul.addr %s1296, 16
          %s1298 = scalar_lea.vmem [#allocation10], %s1297
          %1299 = dma.done %s1295, 256
        $region56: #{tpu_custom_call.1} parent=51 // pred_fallthru
          _
      $region52: #{tpu_custom_call.1} parent=5 // pred_fallthru
        _
    $region6: #{tpu_custom_call.1} parent=1 // loop_footer
      %s21 = sadd.s32 1, %s17
    $region7: #{tpu_custom_call.1} parent=1 // loop_footer_branch
      %16 = sbr.rel target = $region3
    $region8: #{tpu_custom_call.1} parent=1 // loop_exit
      _
    %1300 = vsyncpa [#allocation4], 1
    %s1301 = scalar_lea.sflag [#allocation4], 1
    %1302 = vsyncpa %s1301, 1
    %1303 = vsyncpa [#allocation5], 1
    %s1304 = scalar_lea.sflag [#allocation5], 1
    %1305 = vsyncpa %s1304, 1
    %1306 = vsyncpa [#allocation6], 1
    %s1307 = scalar_lea.sflag [#allocation6], 1
    %1308 = vsyncpa %s1307, 1
    %1309 = vsyncpa [#allocation7], 1
    %s1310 = scalar_lea.sflag [#allocation7], 1
    %1311 = vsyncpa %s1310, 1

</llo_original>
